<compile_context>
chip_gen: v6e
topology: v6e:2x2x1
jax: 0.10.0
libtpu: 0.0.40
codegen_flags: <defaults>
</compile_context>

<pallas_src>
import functools

import numpy as np
import jax
import jax.numpy as jnp
from jax.experimental import pallas as pl
from jax.experimental.pallas import tpu as pltpu


# ---------------------------------------------------------------------------
# Parameter construction (deterministic translation of the module __init__).
# ---------------------------------------------------------------------------
def make_mel_weights(n_channel, fft_length, sample_rate, f_min=0.0, f_max=None):
    if f_max is None:
        f_max = sample_rate / 2
    assert 1 <= n_channel
    assert 2 <= fft_length
    assert 1 <= sample_rate
    assert 0 <= f_min < f_max <= sample_rate / 2

    def hz_to_mel(x):
        return 1127 * np.log(x / 700 + 1)

    lower_bin_index = max(1, int(f_min / sample_rate * fft_length + 1.5))
    upper_bin_index = min(fft_length // 2, int(f_max / sample_rate * fft_length + 0.5))
    mel_min = hz_to_mel(f_min)
    mel_max = hz_to_mel(f_max)

    seed = np.arange(1, n_channel + 2)
    center_frequencies = (mel_max - mel_min) / (n_channel + 1) * seed + mel_min

    seed = np.arange(lower_bin_index, upper_bin_index)
    mel = hz_to_mel(sample_rate * seed / fft_length)
    lower_channel_map = [np.argmax(0 < (m <= center_frequencies)) for m in mel]
    diff = center_frequencies - np.insert(center_frequencies[:-1], 0, mel_min)

    weights = np.zeros((fft_length // 2 + 1, n_channel))
    for i, k in enumerate(seed):
        m = lower_channel_map[i]
        w = (center_frequencies[max(0, m)] - mel[i]) / diff[max(0, m)]
        if 0 < m:
            weights[k, m - 1] += w
        if m < n_channel:
            weights[k, m] += 1 - w
    return weights.astype(np.float32)


# ---------------------------------------------------------------------------
# Helpers
# ---------------------------------------------------------------------------
def _round_up(x, m):
    return ((x + m - 1) // m) * m


def _num_tensorcores():
    """2 TensorCores per chip on v7x, 1 on v5e/v6e (defensive on failure)."""
    try:
        kind = jax.devices()[0].device_kind.lower()
    except Exception:
        return 1
    return 2 if "v7" in kind else 1


def _choose_row_tile(N, K, C, num_tc, align=8,
                     budget_bytes=22 << 20, max_tile=2048):
    """Largest row tile fitting the VMEM budget, with honest lane-padding.

    Accounts for: double-buffered x-in / y-out / E-out blocks (last dims pad
    to 128 lanes in VMEM), the resident f32 H (double-buffered worst case),
    and f32 temporaries inside the kernel (cast/sqrt copy of x, matmul result,
    log outputs).  Single-TC chips (v5e/v6e) get one big tile (no pointless
    splitting); 2-TC chips (v7x) get an even, balanced step count.
    """
    K_lanes = _round_up(K, 128)
    y_lanes = _round_up(C, 128)
    e_lanes = 128
    h_bytes = 2 * _round_up(K, 8) * y_lanes * 4
    per_row = (2 * (K_lanes + y_lanes + e_lanes)      # double-buffered I/O blocks
               + 2 * K_lanes + y_lanes + e_lanes) * 4  # in-kernel f32 temporaries
    tile = max(align, (budget_bytes - h_bytes) // per_row)
    tile = min(int(tile), max_tile, _round_up(N, align))
    tile = max(align, (tile // align) * align)
    if num_tc >= 2:
        steps = -(-N // tile)
        steps = ((max(steps, num_tc) + num_tc - 1) // num_tc) * num_tc
        tile = min(max_tile, max(align, _round_up(-(-N // steps), align)))
    return tile


# ---------------------------------------------------------------------------
# Pallas kernel: (optional sqrt) -> MXU matmul with H -> log(clip)   [y]
#                2*sum(x) - x[0] - x[-1], scaled, log                [E]
# ---------------------------------------------------------------------------
def _make_fbank_kernel(K, C, floor, use_power, precision):
    inv_denom = 1.0 / (2.0 * (K - 1))

    def kernel(x_ref, h_ref, y_ref, e_ref):
        xf = x_ref[...].astype(jnp.float32)        # native-dtype load, f32 compute
        a = xf if use_power else jnp.sqrt(xf)
        z = jnp.dot(a, h_ref[...], preferred_element_type=jnp.float32,
                    precision=precision)           # (tile, C) on the MXU
        y_ref[...] = jnp.log(jnp.maximum(z, floor))
        # E = 2*sum(x[1:-1]) + x[0] + x[-1]  ==  2*sum(x) - x[0] - x[-1]
        e_lin = (2.0 * jnp.sum(xf, axis=-1, keepdims=True)
                 - xf[:, 0:1] - xf[:, K - 1:K])
        e_ref[...] = jnp.log(e_lin * inv_denom)

    return kernel


@functools.partial(
    jax.jit,
    static_argnames=("floor", "use_power", "out_format", "row_tile",
                     "vmem_limit_bytes", "precision"),
)
def _fbank_impl(x, H, *, floor, use_power, out_format, row_tile,
                vmem_limit_bytes, precision):
    K = x.shape[-1]
    C = H.shape[-1]
    assert H.shape[0] == K
    batch_shape = x.shape[:-1]
    N = int(np.prod(batch_shape)) if batch_shape else 1

    if x.dtype == jnp.float64:
        x = x.astype(jnp.float32)
    x2 = x.reshape(N, K)                            # no astype: native dtype to kernel
    Hf = H.astype(jnp.float32)

    # Sub-32-bit inputs pack along sublanes -> keep row blocks aligned to the
    # packed tile height.
    align = 8 if x2.dtype.itemsize >= 4 else (16 if x2.dtype.itemsize == 2 else 32)
    if row_tile is None:
        row_tile = _choose_row_tile(N, K, C, _num_tensorcores(), align=align)
    row_tile = max(align, (int(row_tile) // align) * align)

    kernel = _make_fbank_kernel(K, C, float(floor), bool(use_power), precision)

    y2, e2 = pl.pallas_call(
        kernel,
        out_shape=(jax.ShapeDtypeStruct((N, C), jnp.float32),
                   jax.ShapeDtypeStruct((N, 1), jnp.float32)),
        grid=(pl.cdiv(N, row_tile),),
        in_specs=[
            pl.BlockSpec((row_tile, K), lambda i: (i, 0)),
            pl.BlockSpec((K, C), lambda i: (0, 0)),      # resident across the grid
        ],
        out_specs=(
            pl.BlockSpec((row_tile, C), lambda i: (i, 0)),
            pl.BlockSpec((row_tile, 1), lambda i: (i, 0)),
        ),
        compiler_params=pltpu.CompilerParams(
            dimension_semantics=("parallel",),
            vmem_limit_bytes=vmem_limit_bytes,
        ),
    )(x2, Hf)

    y = y2.reshape(*batch_shape, C)                 # leading-dim reshape only (free)
    E = e2.reshape(*batch_shape, 1)
    if out_format == "y":
        return y
    if out_format == "yE":
        return jnp.concatenate([y, E], axis=-1)
    return y, E                                     # "y,E"


_FORMATS = {0: "y", 1: "yE", 2: "y,E", "y": "y", "yE": "yE", "y,E": "y,E"}


def mel_filter_bank_analysis(x, H, *, floor=1e-5, use_power=False,
                             out_format="y", row_tile=None,
                             vmem_limit_bytes=32 * 1024 * 1024,
                             precision=None):
    """x: (..., K) power spectrum, H: (K, C) mel weights.

    Returns y, (y|E) concat, or (y, E) per out_format, matching the torch
    module's forward.  `precision` (e.g. jax.lax.Precision.HIGHEST) is passed
    to the in-kernel matmul if bit-closer parity with f32 torch is needed.
    """
    if out_format not in _FORMATS:
        raise ValueError(f"out_format {out_format} is not supported")
    return _fbank_impl(x, H, floor=float(floor), use_power=bool(use_power),
                       out_format=_FORMATS[out_format], row_tile=row_tile,
                       vmem_limit_bytes=int(vmem_limit_bytes),
                       precision=precision)


# ---------------------------------------------------------------------------
# Pure-JAX reference (for the sanity check).
# ---------------------------------------------------------------------------
def reference(x, H, floor=1e-5, use_power=False):
    x = x.astype(jnp.float32)
    y = x if use_power else jnp.sqrt(x)
    y = jnp.log(jnp.maximum(y @ H, floor))
    E = (2 * x[..., 1:-1]).sum(-1) + x[..., 0] + x[..., -1]
    E = jnp.log(E / (2 * (x.shape[-1] - 1)))[..., None]
    return y, E


if __name__ == "__main__":
    n_channel = 4
    fft_length = 32
    sample_rate = 8000
    K = fft_length // 2 + 1          # 17

    H = jnp.asarray(make_mel_weights(n_channel, fft_length, sample_rate))

    key = jax.random.PRNGKey(0)
    # power spectrum must be > 0 (sqrt / log)
    x = jax.random.uniform(key, (2, 8, K), dtype=jnp.float32,
                           minval=0.1, maxval=4.0)

    # 'y,E' path
    y, E = mel_filter_bank_analysis(x, H, out_format="y,E")
    jax.block_until_ready((y, E))
    y_ref, E_ref = reference(x, H)
    assert y.shape == (2, 8, n_channel) and E.shape == (2, 8, 1)
    np.testing.assert_allclose(np.asarray(y), np.asarray(y_ref), rtol=1e-4, atol=1e-5)
    np.testing.assert_allclose(np.asarray(E), np.asarray(E_ref), rtol=1e-4, atol=1e-5)

    # default 'y' path
    y_only = mel_filter_bank_analysis(x, H)
    jax.block_until_ready(y_only)
    assert y_only.shape == (2, 8, n_channel)
    np.testing.assert_allclose(np.asarray(y_only), np.asarray(y_ref), rtol=1e-4, atol=1e-5)

    # 'yE' concatenated path
    yE = mel_filter_bank_analysis(x, H, out_format="yE")
    jax.block_until_ready(yE)
    assert yE.shape == (2, 8, n_channel + 1)
    np.testing.assert_allclose(np.asarray(yE[..., :n_channel]), np.asarray(y_ref),
                               rtol=1e-4, atol=1e-5)
    np.testing.assert_allclose(np.asarray(yE[..., n_channel:]), np.asarray(E_ref),
                               rtol=1e-4, atol=1e-5)

    # use_power=True path
    y_pow, E_pow = mel_filter_bank_analysis(x, H, use_power=True, out_format="y,E")
    jax.block_until_ready((y_pow, E_pow))
    y_pow_ref, E_pow_ref = reference(x, H, use_power=True)
    np.testing.assert_allclose(np.asarray(y_pow), np.asarray(y_pow_ref), rtol=1e-4, atol=1e-5)
    np.testing.assert_allclose(np.asarray(E_pow), np.asarray(E_pow_ref), rtol=1e-4, atol=1e-5)

    # bf16 input stays bf16 in HBM; the kernel casts to f32 internally.
    x_bf = x.astype(jnp.bfloat16)
    y_bf, E_bf = mel_filter_bank_analysis(x_bf, H, out_format="y,E")
    jax.block_until_ready((y_bf, E_bf))
    y_bf_ref, E_bf_ref = reference(x_bf, H)
    np.testing.assert_allclose(np.asarray(y_bf), np.asarray(y_bf_ref), rtol=1e-4, atol=1e-4)
    np.testing.assert_allclose(np.asarray(E_bf), np.asarray(E_bf_ref), rtol=1e-4, atol=1e-4)

    print("KERNEL_OK")
</pallas_src>

<mosaic_0001>
module attributes {stable_mosaic.version = 11 : i64} {
  func.func @kernel(%arg0: i32, %arg1: memref<16x17xf32, #tpu.memory_space<vmem>>, %arg2: memref<17x4xf32, #tpu.memory_space<vmem>>, %arg3: memref<16x4xf32, #tpu.memory_space<vmem>>, %arg4: memref<16x1xf32, #tpu.memory_space<vmem>>) attributes {dimension_semantics = [#tpu.dimension_semantics<parallel>], iteration_bounds = array<i64: 1>, scalar_prefetch = 0 : i64, scratch_operands = 0 : i64, tpu.core_type = #tpu.core_type<tc>, window_params = [{transform_indices = @transform_0, window_bounds = array<i64: 16, 17>}, {pipeline_mode = #tpu.pipeline_mode<synchronous>, transform_indices = @transform_1, window_bounds = array<i64: 17, 4>}, {transform_indices = @transform_2, window_bounds = array<i64: 16, 4>}, {transform_indices = @transform_3, window_bounds = array<i64: 16, 1>}]} {
    %c0 = arith.constant 0 : index
    %c0_0 = arith.constant 0 : index
    %0 = vector.load %arg1[%c0, %c0_0] : memref<16x17xf32, #tpu.memory_space<vmem>>, vector<16x17xf32>
    %1 = math.sqrt %0 : vector<16x17xf32>
    %c0_1 = arith.constant 0 : index
    %c0_2 = arith.constant 0 : index
    %2 = vector.load %arg2[%c0_1, %c0_2] : memref<17x4xf32, #tpu.memory_space<vmem>>, vector<17x4xf32>
    %cst = arith.constant dense<0.000000e+00> : vector<16x4xf32>
    %3 = tpu.matmul %1, %2, %cst {dimension_numbers = #tpu.dot_dimension_numbers<[1], [0], [0], [1], [0, 0, 1, 1], [], []>} : vector<16x17xf32>, vector<17x4xf32>, vector<16x4xf32> -> vector<16x4xf32>
    %cst_3 = arith.constant 9.99999974E-6 : f32
    %4 = vector.broadcast %cst_3 : f32 to vector<16x4xf32>
    %5 = arith.maximumf %3, %4 : vector<16x4xf32>
    %6 = math.log %5 : vector<16x4xf32>
    %c0_4 = arith.constant 0 : index
    %c0_5 = arith.constant 0 : index
    %7 = vector.load %arg3[%c0_4, %c0_5] : memref<16x4xf32, #tpu.memory_space<vmem>>, vector<16x4xf32>
    tpu.vector_store %arg3[%c0_4, %c0_5], %6 {strides = array<i32>} : memref<16x4xf32, #tpu.memory_space<vmem>>, vector<16x4xf32>,
    %cst_6 = arith.constant dense<0.000000e+00> : vector<16xf32>
    %8 = vector.multi_reduction <add>, %0, %cst_6 [1] : vector<16x17xf32> to vector<16xf32>
    %9 = vector.shape_cast %8 : vector<16xf32> to vector<16x1xf32>
    %cst_7 = arith.constant 2.000000e+00 : f32
    %10 = vector.broadcast %cst_7 : f32 to vector<16x1xf32>
    %11 = arith.mulf %10, %9 : vector<16x1xf32>
    %12 = vector.extract_strided_slice %0 {offsets = [0, 0], sizes = [16, 1], strides = [1, 1]} : vector<16x17xf32> to vector<16x1xf32>
    %13 = arith.subf %11, %12 : vector<16x1xf32>
    %14 = vector.extract_strided_slice %0 {offsets = [0, 16], sizes = [16, 1], strides = [1, 1]} : vector<16x17xf32> to vector<16x1xf32>
    %15 = arith.subf %13, %14 : vector<16x1xf32>
    %cst_8 = arith.constant 3.125000e-02 : f32
    %16 = vector.broadcast %cst_8 : f32 to vector<16x1xf32>
    %17 = arith.mulf %15, %16 : vector<16x1xf32>
    %18 = math.log %17 : vector<16x1xf32>
    %c0_9 = arith.constant 0 : index
    %c0_10 = arith.constant 0 : index
    %19 = vector.load %arg4[%c0_9, %c0_10] : memref<16x1xf32, #tpu.memory_space<vmem>>, vector<16x1xf32>
    tpu.vector_store %arg4[%c0_9, %c0_10], %18 {strides = array<i32>} : memref<16x1xf32, #tpu.memory_space<vmem>>, vector<16x1xf32>,
    return
  }
  func.func @transform_0(%arg0: i32) -> (i32, i32) {
    %c0_i32 = arith.constant 0 : i32
    %c0_i32_0 = arith.constant 0 : i32
    return %arg0, %c0_i32 : i32, i32
  }
  func.func @transform_1(%arg0: i32) -> (i32, i32) {
    %c0_i32 = arith.constant 0 : i32
    %c0_i32_0 = arith.constant 0 : i32
    %c0_i32_1 = arith.constant 0 : i32
    return %c0_i32, %c0_i32_0 : i32, i32
  }
  func.func @transform_2(%arg0: i32) -> (i32, i32) {
    %c0_i32 = arith.constant 0 : i32
    %c0_i32_0 = arith.constant 0 : i32
    return %arg0, %c0_i32 : i32, i32
  }
  func.func @transform_3(%arg0: i32) -> (i32, i32) {
    %c0_i32 = arith.constant 0 : i32
    %c0_i32_0 = arith.constant 0 : i32
    return %arg0, %c0_i32 : i32, i32
  }
}

</mosaic_0001>

<llo_original>
// kernel: _fbank_impl.1
$region0: #{_fbank_impl.1}
  #allocation0 [shape = 'u32[]', space=smem, size = 0x4, offset = 0x4, fixed_abs, tag = 'smem constant byte address 0x4 - core index']
  #allocation1 [shape = 'u32[144,128]{1,0:T(1,128)}', space=vmem, size = 0x12000, scoped, tag = 'internal scratch']
  %s0 = inlined_call_operand.vmem [shape: f32[16,17], index: 0, kind: input, shape index: {}]
  %s1 = inlined_call_operand.vmem [shape: f32[17,4], index: 1, kind: input, shape index: {}]
  %s2 = inlined_call_operand.vmem [shape: f32[16,4], index: 2, kind: output, shape index: {0}]
  %s3 = inlined_call_operand.vmem [shape: f32[16,1], index: 3, kind: output, shape index: {1}]
  %4 = xla_tuple %s2, %s3
  %s5 = sld [smem:[#allocation0]]
  $region26: #{_fbank_impl.1} parent=0
    _
  %s7 = ssub.s32 1, %s5
  %s8 = scalar_select 0, %s7, %s5
  // Predicated region
  $region2: #{_fbank_impl.1} parent=0 // pred_check
    _
  $region3: #{_fbank_impl.1} parent=0 // pred_check_branch
    %10 = sbr.rel (0) target = $region5
  $region4: #{_fbank_impl.1} parent=0 // pred_region
    _
  $region5: #{_fbank_impl.1} parent=0 // pred_fallthru
    _
  // Predicated region
  $region6: #{_fbank_impl.1} parent=0 // pred_check
    _
  $region7: #{_fbank_impl.1} parent=0 // pred_check_branch
    %12 = sbr.rel (0) target = $region9
  $region8: #{_fbank_impl.1} parent=0 // pred_region
    _
  $region9: #{_fbank_impl.1} parent=0 // pred_fallthru
    _
  %v13 = vld [vmem:[%s0] sm:$0xff]
  %v14 = vld [vmem:[%s0 + $0x8] sm:$0xff]
  %v15 = vrsqrt.pop %v13
  %v16 = vmul.f32 %v13, %v15
  %vm17 = vcmp.eq.f32.partialorder %v13, inf
  %v18 = vsel %vm17, %v13, %v16
  %vm19 = vcmp.eq.f32.partialorder %v13, 0.0
  %v20 = vand.u32 %v13, 2147483648
  %v21 = vsel %vm19, %v20, %v18
  %v22 = vrsqrt.pop %v14
  %v23 = vmul.f32 %v14, %v22
  %vm24 = vcmp.eq.f32.partialorder %v14, inf
  %v25 = vsel %vm24, %v14, %v23
  %vm26 = vcmp.eq.f32.partialorder %v14, 0.0
  %v27 = vand.u32 %v14, 2147483648
  %v28 = vsel %vm26, %v27, %v25
  %v29 = vld [vmem:[%s1] sm:$0xff]
  %v30 = vld [vmem:[%s1 + $0x8] sm:$0xff]
  %v31 = vld [vmem:[%s1 + $0x10] sm:$0x1]
  %vm32 = vcmask 138240
  %v34 = vsel %vm32, %v21, 0
  %v37 = vsel %vm32, %v28, 0
  %vm39 = vcmask 1040384
  %v41 = vsel %vm39, %v31, 0
  %43 = vmatprep.subr.mxu0 0.0
  %44 = vmatpush1.msra.mxu0 0.0
  %45 = vmatprep.subr.mxu0 0.0
  %46 = vmatpush1.msra.mxu0 0.0
  %47 = vmatprep.subr.mxu0 0.0
  %48 = vmatpush1.msra.mxu0 0.0
  %49 = vmatprep.subr.mxu0 0.0
  %50 = vmatpush1.msra.mxu0 0.0
  %51 = vmatprep.subr.mxu0 0.0
  %52 = vmatpush1.msra.mxu0 0.0
  %53 = vmatprep.subr.mxu0 0.0
  %54 = vmatpush1.msra.mxu0 0.0
  %55 = vmatprep.subr.mxu0 0.0
  %56 = vmatpush1.msra.mxu0 0.0
  %57 = vmatprep.subr.mxu0 0.0
  %58 = vmatpush1.msra.mxu0 0.0
  %59 = vmatprep.subr.mxu0 0.0
  %60 = vmatpush1.msra.mxu0 0.0
  %61 = vmatprep.subr.mxu0 0.0
  %62 = vmatpush1.msra.mxu0 0.0
  %63 = vmatprep.subr.mxu0 0.0
  %64 = vmatpush1.msra.mxu0 0.0
  %65 = vmatprep.subr.mxu0 0.0
  %66 = vmatpush1.msra.mxu0 0.0
  %67 = vmatprep.subr.mxu0 0.0
  %68 = vmatpush1.msra.mxu0 0.0
  %69 = vmatprep.subr.mxu0 0.0
  %70 = vmatpush1.msra.mxu0 %v41
  %71 = vmatprep.subr.mxu0 0.0
  %72 = vmatpush1.msra.mxu0 %v30
  %73 = vmatprep.subr.mxu0 0.0
  %74 = vmatpush1.msra.mxu0 %v29
  %75 = vmatprep.subr.mxu0 0.0
  %76 = vmatpush2.msra.mxu0 0.0
  %77 = vmatprep.subr.mxu0 0.0
  %78 = vmatpush2.msra.mxu0 0.0
  %79 = vmatprep.subr.mxu0 0.0
  %80 = vmatpush2.msra.mxu0 0.0
  %81 = vmatprep.subr.mxu0 0.0
  %82 = vmatpush2.msra.mxu0 0.0
  %83 = vmatprep.subr.mxu0 0.0
  %84 = vmatpush2.msra.mxu0 0.0
  %85 = vmatprep.subr.mxu0 0.0
  %86 = vmatpush2.msra.mxu0 0.0
  %87 = vmatprep.subr.mxu0 0.0
  %88 = vmatpush2.msra.mxu0 0.0
  %89 = vmatprep.subr.mxu0 0.0
  %90 = vmatpush2.msra.mxu0 0.0
  %91 = vmatprep.subr.mxu0 0.0
  %92 = vmatpush2.msra.mxu0 0.0
  %93 = vmatprep.subr.mxu0 0.0
  %94 = vmatpush2.msra.mxu0 0.0
  %95 = vmatprep.subr.mxu0 0.0
  %96 = vmatpush2.msra.mxu0 0.0
  %97 = vmatprep.subr.mxu0 0.0
  %98 = vmatpush2.msra.mxu0 0.0
  %99 = vmatprep.subr.mxu0 0.0
  %100 = vmatpush2.msra.mxu0 0.0
  %101 = vmatprep.subr.mxu0 0.0
  %102 = vmatpush2.msra.mxu0 0.0
  %103 = vmatprep.subr.mxu0 0.0
  %104 = vmatpush2.msra.mxu0 0.0
  %105 = vmatprep.subr.mxu0 0.0
  %106 = vmatpush2.msra.mxu0 0.0
  %107 = vmatprep.mubr.f32.mxu0 0.0
  %108 = vmatmul.mubr.f32.gmra.mxu0 %v34
  %v109 = vpop.f32.mrf.mxu0
  %v110 = vadd.f32 0.0, %v109
  %v111 = vpop.f32.mrf.mxu0
  %112 = vmatprep.mubr.f32.mxu0 0.0
  %113 = vmatmul.mubr.f32.gmra.mxu0 %v37
  %v114 = vpop.f32.mrf.mxu0
  %v115 = vadd.f32 0.0, %v114
  %v116 = vpop.f32.mrf.mxu0
  %117 = vdwg.mxu0
  %v118 = vmax.f32 %v110, 1e-05
  %v119 = vmax.f32 %v115, 1e-05
  %v120 = vlog2.pop %v118
  %v121 = vmul.f32 %v120, 0.6931472
  %v122 = vlog2.pop %v119
  %v123 = vmul.f32 %v122, 0.6931472
  %vm124 = vcmask 31744
  %125 = vst.msk [vmem:[%s2] sm:$0xff] %vm124, %v121
  %126 = vst.msk [vmem:[%s2 + $0x8] sm:$0xff] %vm124, %v123
  %v127 = vsel %vm32, %v13, 0.0
  %128 = vadd.xlane.f32.xlu0 %v127
  %v129 = vpop.xlane.xlu0 %128
  %v130 = vsel %vm32, %v14, 0.0
  %131 = vadd.xlane.f32.xlu0 %v130
  %v132 = vpop.xlane.xlu0 %131
  %v133 = vmul.f32 %v129, 2.0
  %v134 = vmul.f32 %v132, 2.0
  %v135 = vsub.f32 %v133, %v13
  %v136 = vsub.f32 %v134, %v14
  %139 = vrot.lane.b32.xlu0 %v13, 112
  %v140 = vpop.permute.xlu0 %139
  %141 = vrot.lane.b32.xlu0 %v14, 112
  %v142 = vpop.permute.xlu0 %141
  %v145 = vsub.f32 %v135, %v140
  %v146 = vsub.f32 %v136, %v142
  %v147 = vmul.f32 %v145, 0.03125
  %v148 = vmul.f32 %v146, 0.03125
  %v149 = vlog2.pop %v147
  %v150 = vmul.f32 %v149, 0.6931472
  %v151 = vlog2.pop %v148
  %v152 = vmul.f32 %v151, 0.6931472
  %vm153 = vcmask 7168
  %154 = vst.msk [vmem:[%s3] sm:$0xff] %vm153, %v150
  %155 = vst.msk [vmem:[%s3 + $0x8] sm:$0xff] %vm153, %v152
  // Predicated region
  $region10: #{_fbank_impl.1} parent=0 // pred_check
    _
  $region11: #{_fbank_impl.1} parent=0 // pred_check_branch
    %157 = sbr.rel (0) target = $region13
  $region12: #{_fbank_impl.1} parent=0 // pred_region
    _
  $region13: #{_fbank_impl.1} parent=0 // pred_fallthru
    _
  // Predicated region
  $region14: #{_fbank_impl.1} parent=0 // pred_check
    _
  $region15: #{_fbank_impl.1} parent=0 // pred_check_branch
    %159 = sbr.rel (0) target = $region17
  $region16: #{_fbank_impl.1} parent=0 // pred_region
    _
  $region17: #{_fbank_impl.1} parent=0 // pred_fallthru
    _
  // Predicated region
  $region18: #{_fbank_impl.1} parent=0 // pred_check
    _
  $region19: #{_fbank_impl.1} parent=0 // pred_check_branch
    %161 = sbr.rel (0) target = $region21
  $region20: #{_fbank_impl.1} parent=0 // pred_region
    _
  $region21: #{_fbank_impl.1} parent=0 // pred_fallthru
    _
  // Predicated region
  $region22: #{_fbank_impl.1} parent=0 // pred_check
    _
  $region23: #{_fbank_impl.1} parent=0 // pred_check_branch
    %163 = sbr.rel (0) target = $region25
  $region24: #{_fbank_impl.1} parent=0 // pred_region
    _
  $region25: #{_fbank_impl.1} parent=0 // pred_fallthru
    _

</llo_original>
